<compile_context>
chip_gen: v7x
topology: tpu7x:2x2x1
jax: 0.10.0
libtpu: 0.0.40
codegen_flags: <defaults>
</compile_context>

<pallas_src>
import jax
import jax.numpy as jnp
from jax.experimental import pallas as pl
from jax.experimental.pallas import tpu as pltpu


# -----------------------------------------------------------------------------
# Helpers
# -----------------------------------------------------------------------------
def _round_up(x, m):
    return (x + m - 1) // m * m


def _block_diag(a, b):
    out = jnp.zeros((a.shape[0] + b.shape[0], a.shape[1] + b.shape[1]), dtype=a.dtype)
    out = out.at[: a.shape[0], : a.shape[1]].set(a)
    out = out.at[a.shape[0]:, a.shape[1]:].set(b)
    return out


# -----------------------------------------------------------------------------
# Kernel: one fused 3-layer MLP over the packed (mu | logvar) weights.
# -----------------------------------------------------------------------------
def _gaussian_mlp_fused_kernel(x_ref, w1_ref, b1_ref, w2_ref, b2_ref,
                               w3_ref, b3_ref, out_ref):
    x = x_ref[...]                         # native dtype straight into the MXU
    h = jnp.dot(x, w1_ref[...], preferred_element_type=jnp.float32) + b1_ref[...]
    h = jnp.maximum(h, 0.0)                # f32 epilogue (v5e-safe)
    h = jnp.dot(h, w2_ref[...], preferred_element_type=jnp.float32) + b2_ref[...]
    h = jnp.maximum(h, 0.0)
    out = jnp.dot(h, w3_ref[...], preferred_element_type=jnp.float32) + b3_ref[...]
    out_ref[...] = out.astype(out_ref.dtype)   # single lane-dense store


# -----------------------------------------------------------------------------
# One-time weight packing (mu & logvar fused, output lanes padded to 128)
# -----------------------------------------------------------------------------
def pack_gaussian_mlp_params(params):
    """params: {'mu': [(W,b)x3], 'logvar': [(W,b)x3]} -> packed dict."""
    (w1m, b1m), (w2m, b2m), (w3m, b3m) = params["mu"]
    (w1v, b1v), (w2v, b2v), (w3v, b3v) = params["logvar"]
    d_out = w3m.shape[1]

    w1p = jnp.concatenate([w1m, w1v], axis=1)          # (D_in, 2*H1)
    b1p = jnp.concatenate([b1m, b1v], axis=1)          # (1, 2*H1)
    w2p = _block_diag(w2m, w2v)                        # (2*H1, 2*H2)
    b2p = jnp.concatenate([b2m, b2v], axis=1)          # (1, 2*H2)
    w3p = _block_diag(w3m, w3v)                        # (2*H2, 2*D_out)
    b3p = jnp.concatenate([b3m, b3v], axis=1)          # (1, 2*D_out)

    n_pad = _round_up(2 * d_out, 128)                  # lane-dense output slab
    if n_pad > 2 * d_out:
        w3p = jnp.pad(w3p, ((0, 0), (0, n_pad - 2 * d_out)))
        b3p = jnp.pad(b3p, ((0, 0), (0, n_pad - 2 * d_out)))

    return {
        "w1": w1p, "b1": b1p.astype(jnp.float32),
        "w2": w2p, "b2": b2p.astype(jnp.float32),
        "w3": w3p, "b3": b3p.astype(jnp.float32),
        "d_out": int(d_out), "n_pad": int(n_pad),
    }


# -----------------------------------------------------------------------------
# Wrapper
# -----------------------------------------------------------------------------
def gaussian_mlp_forward(packed, *args, max_block_batch=256):
    """packed: output of pack_gaussian_mlp_params.
    *args: arrays of shape (batch, d_i); hstacked (concat on last axis) before
    the MLP, matching torch.hstack in the reference MLP.forward."""
    x = jnp.concatenate(args, axis=-1)
    B, D_in = x.shape
    d_out, n_pad = packed["d_out"], packed["n_pad"]

    # Large batch tile (amortize per-step overhead, fill MXU rows); pad the
    # batch with zero rows so arbitrary B works.  max_block_batch keeps >=2
    # grid steps for big batches so v7x's two TensorCores both get work.
    block_batch = min(_round_up(B, 8), _round_up(max_block_batch, 8))
    padded_B = _round_up(B, block_batch)
    if padded_B != B:
        x = jnp.pad(x, ((0, padded_B - B), (0, 0)))
    grid = (padded_B // block_batch,)

    # Weights matmul in x's dtype (bf16 goes straight to the MXU); biases f32.
    w1 = packed["w1"].astype(x.dtype)
    w2 = packed["w2"].astype(x.dtype)
    w3 = packed["w3"].astype(x.dtype)
    b1, b2, b3 = packed["b1"], packed["b2"], packed["b3"]

    x_spec = pl.BlockSpec((block_batch, D_in), lambda i: (i, 0))
    out_spec = pl.BlockSpec((block_batch, n_pad), lambda i: (i, 0))
    weight_specs = [pl.BlockSpec(a.shape, lambda i: (0, 0))
                    for a in (w1, b1, w2, b2, w3, b3)]

    fn = pl.pallas_call(
        _gaussian_mlp_fused_kernel,
        out_shape=jax.ShapeDtypeStruct((padded_B, n_pad), x.dtype),
        grid_spec=pltpu.PrefetchScalarGridSpec(
            num_scalar_prefetch=0,
            grid=grid,
            in_specs=[x_spec] + weight_specs,
            out_specs=out_spec,
        ),
        compiler_params=pltpu.CompilerParams(
            dimension_semantics=("parallel",),
            # Explicit VMEM budget (safe on v5e/v6e/v7x); this kernel's
            # resident footprint is well under 1 MiB at these sizes.
            vmem_limit_bytes=32 * 1024 * 1024,
        ),
    )

    out = fn(x, w1, b1, w2, b2, w3, b3)
    mu = out[:B, :d_out]
    logvar = out[:B, d_out:2 * d_out]
    return mu, logvar


# -----------------------------------------------------------------------------
# Deterministic parameter init (mirrors nn.Linear default: U(-1/sqrt(in), +))
# -----------------------------------------------------------------------------
def init_mlp_params(key, input_dim, hidden_dims, output_dim, dtype=jnp.float32):
    dims = [input_dim] + list(hidden_dims) + [output_dim]
    layers = []
    for i in range(len(dims) - 1):
        fan_in, fan_out = dims[i], dims[i + 1]
        key, kw, kb = jax.random.split(key, 3)
        bound = 1.0 / jnp.sqrt(fan_in)
        w = jax.random.uniform(kw, (fan_in, fan_out), dtype, -bound, bound)
        b = jax.random.uniform(kb, (1, fan_out), dtype, -bound, bound)
        layers.append((w, b))
    return layers, key


def init_gaussian_mlp_params(key, input_dim, hidden_dims, output_dim):
    mu_layers, key = init_mlp_params(key, input_dim, hidden_dims, output_dim)
    lv_layers, key = init_mlp_params(key, input_dim, hidden_dims, output_dim)
    return {"mu": mu_layers, "logvar": lv_layers}


# -----------------------------------------------------------------------------
# Pure-JAX reference for correctness check
# -----------------------------------------------------------------------------
def reference_forward(params, *args):
    x = jnp.concatenate(args, axis=-1)

    def mlp(layers, x):
        h = x
        for i, (w, b) in enumerate(layers):
            h = h @ w + b
            if i < len(layers) - 1:
                h = jnp.maximum(h, 0.0)
        return h

    return mlp(params["mu"], x), mlp(params["logvar"], x)


if __name__ == "__main__":
    # Small shapes: two input args of widths 20 and 12 -> input_dim=32,
    # hidden_dims=[64, 64], output_dim=16.
    input_dims = (20, 12)
    input_dim = sum(input_dims)
    hidden_dims = [64, 64]
    output_dim = 16

    key = jax.random.PRNGKey(0)
    key, kp = jax.random.split(key)
    params = init_gaussian_mlp_params(kp, input_dim, hidden_dims, output_dim)
    packed = pack_gaussian_mlp_params(params)

    for batch in (64, 50):   # 50 exercises the batch-padding path
        key, k1, k2 = jax.random.split(key, 3)
        x1 = jax.random.normal(k1, (batch, input_dims[0]), jnp.float32)
        x2 = jax.random.normal(k2, (batch, input_dims[1]), jnp.float32)

        mu, logvar = gaussian_mlp_forward(packed, x1, x2)
        mu = jax.block_until_ready(mu)
        logvar = jax.block_until_ready(logvar)

        mu_ref, logvar_ref = reference_forward(params, x1, x2)
        assert mu.shape == (batch, output_dim)
        assert logvar.shape == (batch, output_dim)
        assert jnp.allclose(mu, mu_ref, atol=1e-5, rtol=1e-5)
        assert jnp.allclose(logvar, logvar_ref, atol=1e-5, rtol=1e-5)

    print("KERNEL_OK")
</pallas_src>

<mosaic_0001>
module attributes {stable_mosaic.version = 11 : i64} {
  func.func @_gaussian_mlp_fused_kernel(%arg0: i32, %arg1: memref<64x32xf32, #tpu.memory_space<vmem>>, %arg2: memref<32x128xf32, #tpu.memory_space<vmem>>, %arg3: memref<1x128xf32, #tpu.memory_space<vmem>>, %arg4: memref<128x128xf32, #tpu.memory_space<vmem>>, %arg5: memref<1x128xf32, #tpu.memory_space<vmem>>, %arg6: memref<128x128xf32, #tpu.memory_space<vmem>>, %arg7: memref<1x128xf32, #tpu.memory_space<vmem>>, %arg8: memref<64x128xf32, #tpu.memory_space<vmem>>) attributes {dimension_semantics = [#tpu.dimension_semantics<parallel>], iteration_bounds = array<i64: 1>, scalar_prefetch = 0 : i64, scratch_operands = 0 : i64, tpu.core_type = #tpu.core_type<tc>, window_params = [{transform_indices = @transform_0, window_bounds = array<i64: 64, 32>}, {pipeline_mode = #tpu.pipeline_mode<synchronous>, transform_indices = @transform_1, window_bounds = array<i64: 32, 128>}, {pipeline_mode = #tpu.pipeline_mode<synchronous>, transform_indices = @transform_2, window_bounds = array<i64: 1, 128>}, {pipeline_mode = #tpu.pipeline_mode<synchronous>, transform_indices = @transform_3, window_bounds = array<i64: 128, 128>}, {pipeline_mode = #tpu.pipeline_mode<synchronous>, transform_indices = @transform_4, window_bounds = array<i64: 1, 128>}, {pipeline_mode = #tpu.pipeline_mode<synchronous>, transform_indices = @transform_5, window_bounds = array<i64: 128, 128>}, {pipeline_mode = #tpu.pipeline_mode<synchronous>, transform_indices = @transform_6, window_bounds = array<i64: 1, 128>}, {transform_indices = @transform_7, window_bounds = array<i64: 64, 128>}]} {
    %c0 = arith.constant 0 : index
    %c0_0 = arith.constant 0 : index
    %0 = vector.load %arg1[%c0, %c0_0] : memref<64x32xf32, #tpu.memory_space<vmem>>, vector<64x32xf32>
    %c0_1 = arith.constant 0 : index
    %c0_2 = arith.constant 0 : index
    %1 = vector.load %arg2[%c0_1, %c0_2] : memref<32x128xf32, #tpu.memory_space<vmem>>, vector<32x128xf32>
    %cst = arith.constant dense<0.000000e+00> : vector<64x128xf32>
    %2 = tpu.matmul %0, %1, %cst {dimension_numbers = #tpu.dot_dimension_numbers<[1], [0], [0], [1], [0, 0, 1, 1], [], []>} : vector<64x32xf32>, vector<32x128xf32>, vector<64x128xf32> -> vector<64x128xf32>
    %c0_3 = arith.constant 0 : index
    %c0_4 = arith.constant 0 : index
    %3 = vector.load %arg3[%c0_3, %c0_4] : memref<1x128xf32, #tpu.memory_space<vmem>>, vector<1x128xf32>
    %4 = vector.broadcast %3 : vector<1x128xf32> to vector<64x128xf32>
    %5 = arith.addf %2, %4 : vector<64x128xf32>
    %cst_5 = arith.constant 0.000000e+00 : f32
    %6 = vector.broadcast %cst_5 : f32 to vector<64x128xf32>
    %7 = arith.maximumf %5, %6 : vector<64x128xf32>
    %c0_6 = arith.constant 0 : index
    %c0_7 = arith.constant 0 : index
    %8 = vector.load %arg4[%c0_6, %c0_7] : memref<128x128xf32, #tpu.memory_space<vmem>>, vector<128x128xf32>
    %cst_8 = arith.constant dense<0.000000e+00> : vector<64x128xf32>
    %9 = tpu.matmul %7, %8, %cst_8 {dimension_numbers = #tpu.dot_dimension_numbers<[1], [0], [0], [1], [0, 0, 1, 1], [], []>} : vector<64x128xf32>, vector<128x128xf32>, vector<64x128xf32> -> vector<64x128xf32>
    %c0_9 = arith.constant 0 : index
    %c0_10 = arith.constant 0 : index
    %10 = vector.load %arg5[%c0_9, %c0_10] : memref<1x128xf32, #tpu.memory_space<vmem>>, vector<1x128xf32>
    %11 = vector.broadcast %10 : vector<1x128xf32> to vector<64x128xf32>
    %12 = arith.addf %9, %11 : vector<64x128xf32>
    %cst_11 = arith.constant 0.000000e+00 : f32
    %13 = vector.broadcast %cst_11 : f32 to vector<64x128xf32>
    %14 = arith.maximumf %12, %13 : vector<64x128xf32>
    %c0_12 = arith.constant 0 : index
    %c0_13 = arith.constant 0 : index
    %15 = vector.load %arg6[%c0_12, %c0_13] : memref<128x128xf32, #tpu.memory_space<vmem>>, vector<128x128xf32>
    %cst_14 = arith.constant dense<0.000000e+00> : vector<64x128xf32>
    %16 = tpu.matmul %14, %15, %cst_14 {dimension_numbers = #tpu.dot_dimension_numbers<[1], [0], [0], [1], [0, 0, 1, 1], [], []>} : vector<64x128xf32>, vector<128x128xf32>, vector<64x128xf32> -> vector<64x128xf32>
    %c0_15 = arith.constant 0 : index
    %c0_16 = arith.constant 0 : index
    %17 = vector.load %arg7[%c0_15, %c0_16] : memref<1x128xf32, #tpu.memory_space<vmem>>, vector<1x128xf32>
    %18 = vector.broadcast %17 : vector<1x128xf32> to vector<64x128xf32>
    %19 = arith.addf %16, %18 : vector<64x128xf32>
    %c0_17 = arith.constant 0 : index
    %c0_18 = arith.constant 0 : index
    %20 = vector.load %arg8[%c0_17, %c0_18] : memref<64x128xf32, #tpu.memory_space<vmem>>, vector<64x128xf32>
    tpu.vector_store %arg8[%c0_17, %c0_18], %19 {strides = array<i32>} : memref<64x128xf32, #tpu.memory_space<vmem>>, vector<64x128xf32>,
    return
  }
  func.func @transform_0(%arg0: i32) -> (i32, i32) {
    %c0_i32 = arith.constant 0 : i32
    %c0_i32_0 = arith.constant 0 : i32
    return %arg0, %c0_i32 : i32, i32
  }
  func.func @transform_1(%arg0: i32) -> (i32, i32) {
    %c0_i32 = arith.constant 0 : i32
    %c0_i32_0 = arith.constant 0 : i32
    %c0_i32_1 = arith.constant 0 : i32
    return %c0_i32, %c0_i32_0 : i32, i32
  }
  func.func @transform_2(%arg0: i32) -> (i32, i32) {
    %c0_i32 = arith.constant 0 : i32
    %c0_i32_0 = arith.constant 0 : i32
    %c0_i32_1 = arith.constant 0 : i32
    return %c0_i32, %c0_i32_0 : i32, i32
  }
  func.func @transform_3(%arg0: i32) -> (i32, i32) {
    %c0_i32 = arith.constant 0 : i32
    %c0_i32_0 = arith.constant 0 : i32
    %c0_i32_1 = arith.constant 0 : i32
    return %c0_i32, %c0_i32_0 : i32, i32
  }
  func.func @transform_4(%arg0: i32) -> (i32, i32) {
    %c0_i32 = arith.constant 0 : i32
    %c0_i32_0 = arith.constant 0 : i32
    %c0_i32_1 = arith.constant 0 : i32
    return %c0_i32, %c0_i32_0 : i32, i32
  }
  func.func @transform_5(%arg0: i32) -> (i32, i32) {
    %c0_i32 = arith.constant 0 : i32
    %c0_i32_0 = arith.constant 0 : i32
    %c0_i32_1 = arith.constant 0 : i32
    return %c0_i32, %c0_i32_0 : i32, i32
  }
  func.func @transform_6(%arg0: i32) -> (i32, i32) {
    %c0_i32 = arith.constant 0 : i32
    %c0_i32_0 = arith.constant 0 : i32
    %c0_i32_1 = arith.constant 0 : i32
    return %c0_i32, %c0_i32_0 : i32, i32
  }
  func.func @transform_7(%arg0: i32) -> (i32, i32) {
    %c0_i32 = arith.constant 0 : i32
    %c0_i32_0 = arith.constant 0 : i32
    return %arg0, %c0_i32 : i32, i32
  }
}

</mosaic_0001>

<llo_original>
// kernel: tpu_custom_call.1
$region0: #{tpu_custom_call.1}
  #allocation0 [shape = 'u32[]', space=smem, size = 0x4, offset = 0x4, fixed_abs, tag = 'smem constant byte address 0x4 - core index']
  #allocation1 [shape = 'u32[144,128]{1,0:T(1,128)}', space=vmem, size = 0x12000, scoped, tag = 'internal scratch']
  %s0 = inlined_call_operand.vmem [shape: f32[64,32], index: 0, kind: input, shape index: {}]
  %s1 = inlined_call_operand.vmem [shape: f32[32,128], index: 1, kind: input, shape index: {}]
  %s2 = inlined_call_operand.vmem [shape: f32[1,128], index: 2, kind: input, shape index: {}]
  %s3 = inlined_call_operand.hbm [shape: f32[128,128], index: 3, kind: input, shape index: {}]
  %s4 = inlined_call_operand.vmem [shape: f32[1,128], index: 4, kind: input, shape index: {}]
  %s5 = inlined_call_operand.hbm [shape: f32[128,128], index: 5, kind: input, shape index: {}]
  %s6 = inlined_call_operand.vmem [shape: f32[1,128], index: 6, kind: input, shape index: {}]
  %s7 = inlined_call_operand.hbm [shape: f32[64,128], index: 7, kind: output, shape index: {}]
  %s8 = sld [smem:[#allocation0]]
  $region46: #{tpu_custom_call.1} parent=0
    _
  %s10 = ssub.s32 1, %s8
  %s11 = scalar_select 0, %s10, %s8
  $region1: #{tpu_custom_call.1} parent=0
    #allocation2 [shape = 'u8[65536]{0}', space=vmem, size = 0x10000, scoped, tag = 'input window, operand 3, single buffered']
    #allocation3 [shape = 's32[1]{0}', space=sflag, size = 0x4, scoped, tag = 'scoped memory for tpu_custom_call.1']
    #allocation4 [shape = 's32[1]{0}', space=sflag, size = 0x4, scoped, tag = 'scoped memory for tpu_custom_call.1']
    #allocation5 [shape = 'u8[65536]{0}', space=vmem, size = 0x10000, scoped, tag = 'input window, operand 5, single buffered']
    #allocation6 [shape = 's32[1]{0}', space=sflag, size = 0x4, scoped, tag = 'scoped memory for tpu_custom_call.1']
    #allocation7 [shape = 'u8[32768]{0}', space=vmem, size = 0x8000, scoped, tag = 'output window, operand 0, single buffered']
    %12 = vsyncpa [#allocation3], 0
    %13 = vsyncpa [#allocation6], 0
    %14 = vsyncpa [#allocation4], 0
    // Predicated region
    $region2: #{tpu_custom_call.1} parent=1 // pred_check
      _
    $region3: #{tpu_custom_call.1} parent=1 // pred_check_branch
      %16 = sbr.rel (0) target = $region5
    $region4: #{tpu_custom_call.1} parent=1 // pred_region
      _
    $region5: #{tpu_custom_call.1} parent=1 // pred_fallthru
      _
    // Predicated region
    $region6: #{tpu_custom_call.1} parent=1 // pred_check
      _
    $region7: #{tpu_custom_call.1} parent=1 // pred_check_branch
      %18 = sbr.rel (0) target = $region9
    $region8: #{tpu_custom_call.1} parent=1 // pred_region
      _
    $region9: #{tpu_custom_call.1} parent=1 // pred_fallthru
      _
    // Predicated region
    $region10: #{tpu_custom_call.1} parent=1 // pred_check
      _
    $region11: #{tpu_custom_call.1} parent=1 // pred_check_branch
      %20 = sbr.rel (0) target = $region13
    $region12: #{tpu_custom_call.1} parent=1 // pred_region
      _
    $region13: #{tpu_custom_call.1} parent=1 // pred_fallthru
      _
    // Predicated region
    $region14: #{tpu_custom_call.1} parent=1 // pred_check
      _
    $region15: #{tpu_custom_call.1} parent=1 // pred_check_branch
      %22 = sbr.rel (0) target = $region17
    $region16: #{tpu_custom_call.1} parent=1 // pred_region
      %s24 = ssub.s32 2048, 2048
      %25 = vsyncadd [#allocation3], %s24
      %s26 = sshll.u32 [#allocation2], 4
      %s27 = int_to_ptr.vmem [resolvable:$true] %s26
      %32 = dma.hbm_to_vmem [thread:$0]  %s3, 2048, %s27, [#allocation3], 128, 128, 8
    $region17: #{tpu_custom_call.1} parent=1 // pred_fallthru
      _
    // Predicated region
    $region18: #{tpu_custom_call.1} parent=1 // pred_check
      _
    $region19: #{tpu_custom_call.1} parent=1 // pred_check_branch
      %34 = sbr.rel (0) target = $region21
    $region20: #{tpu_custom_call.1} parent=1 // pred_region
      _
    $region21: #{tpu_custom_call.1} parent=1 // pred_fallthru
      _
    // Predicated region
    $region22: #{tpu_custom_call.1} parent=1 // pred_check
      _
    $region23: #{tpu_custom_call.1} parent=1 // pred_check_branch
      %36 = sbr.rel (0) target = $region25
    $region24: #{tpu_custom_call.1} parent=1 // pred_region
      %s38 = ssub.s32 2048, 2048
      %39 = vsyncadd [#allocation6], %s38
      %s40 = sshll.u32 [#allocation5], 4
      %s41 = int_to_ptr.vmem [resolvable:$true] %s40
      %46 = dma.hbm_to_vmem [thread:$0]  %s5, 2048, %s41, [#allocation6], 128, 128, 8
    $region25: #{tpu_custom_call.1} parent=1 // pred_fallthru
      _
    // Predicated region
    $region26: #{tpu_custom_call.1} parent=1 // pred_check
      _
    $region27: #{tpu_custom_call.1} parent=1 // pred_check_branch
      %48 = sbr.rel (0) target = $region29
    $region28: #{tpu_custom_call.1} parent=1 // pred_region
      _
    $region29: #{tpu_custom_call.1} parent=1 // pred_fallthru
      _
    // Predicated region
    $region30: #{tpu_custom_call.1} parent=1 // pred_check
      _
    $region31: #{tpu_custom_call.1} parent=1 // pred_check_branch
      %50 = sbr.rel (0) target = $region33
    $region32: #{tpu_custom_call.1} parent=1 // pred_region
      %51 = dma.done [#allocation3], 2048
    $region33: #{tpu_custom_call.1} parent=1 // pred_fallthru
      _
    // Predicated region
    $region34: #{tpu_custom_call.1} parent=1 // pred_check
      _
    $region35: #{tpu_custom_call.1} parent=1 // pred_check_branch
      %53 = sbr.rel (0) target = $region37
    $region36: #{tpu_custom_call.1} parent=1 // pred_region
      %54 = dma.done [#allocation6], 2048
    $region37: #{tpu_custom_call.1} parent=1 // pred_fallthru
      _
    %v55 = vld [vmem:[%s0] sm:$0xff]
    %v56 = vld [vmem:[%s0 + $0x8] sm:$0xff]
    %v57 = vld [vmem:[%s0 + $0x10] sm:$0xff]
    %v58 = vld [vmem:[%s0 + $0x18] sm:$0xff]
    %v59 = vld [vmem:[%s0 + $0x20] sm:$0xff]
    %v60 = vld [vmem:[%s0 + $0x28] sm:$0xff]
    %v61 = vld [vmem:[%s0 + $0x30] sm:$0xff]
    %v62 = vld [vmem:[%s0 + $0x38] sm:$0xff]
    %v63 = vld [vmem:[%s1] sm:$0xff]
    %v64 = vld [vmem:[%s1 + $0x8] sm:$0xff]
    %v65 = vld [vmem:[%s1 + $0x10] sm:$0xff]
    %v66 = vld [vmem:[%s1 + $0x18] sm:$0xff]
    %v67 = vld [vmem:[%s2] sm:$0x1]
    %v69 = vlaneseq
    %v70 = vshrl.u32 %v69, 7
    %v71 = vsub.s32 0, %v70
    %v72 = vrot.slane %v67, %v71
    %vm74 = vcmask 261120
    %v76 = vsel %vm74, %v55, 0
    %v79 = vsel %vm74, %v56, 0
    %v82 = vsel %vm74, %v57, 0
    %v85 = vsel %vm74, %v58, 0
    %v88 = vsel %vm74, %v59, 0
    %v91 = vsel %vm74, %v60, 0
    %v94 = vsel %vm74, %v61, 0
    %v97 = vsel %vm74, %v62, 0
    %99 = vmatprep.subr.mxu0 0.0
    %100 = vmatpush1.msra.mxu0 %v63
    %101 = vmatprep.subr.mxu0 0.0
    %102 = vmatpush1.msra.mxu0 %v64
    %103 = vmatprep.subr.mxu0 0.0
    %104 = vmatpush1.msra.mxu0 %v65
    %105 = vmatprep.subr.mxu0 0.0
    %106 = vmatpush1.msra.mxu0 %v66
    %107 = vmatprep.subr.mxu0 0.0
    %108 = vmatpush1.msra.mxu0 0.0
    %109 = vmatprep.subr.mxu0 0.0
    %110 = vmatpush1.msra.mxu0 0.0
    %111 = vmatprep.subr.mxu0 0.0
    %112 = vmatpush1.msra.mxu0 0.0
    %113 = vmatprep.subr.mxu0 0.0
    %114 = vmatpush1.msra.mxu0 0.0
    %115 = vmatprep.subr.mxu0 0.0
    %116 = vmatpush1.msra.mxu0 0.0
    %117 = vmatprep.subr.mxu0 0.0
    %118 = vmatpush1.msra.mxu0 0.0
    %119 = vmatprep.subr.mxu0 0.0
    %120 = vmatpush1.msra.mxu0 0.0
    %121 = vmatprep.subr.mxu0 0.0
    %122 = vmatpush1.msra.mxu0 0.0
    %123 = vmatprep.subr.mxu0 0.0
    %124 = vmatpush1.msra.mxu0 0.0
    %125 = vmatprep.subr.mxu0 0.0
    %126 = vmatpush1.msra.mxu0 0.0
    %127 = vmatprep.subr.mxu0 0.0
    %128 = vmatpush1.msra.mxu0 0.0
    %129 = vmatprep.subr.mxu0 0.0
    %130 = vmatpush1.msra.mxu0 0.0
    %131 = vmatprep.subr.mxu0 0.0
    %132 = vmatpush1.msra.mxu0 0.0
    %133 = vmatprep.subr.mxu0 0.0
    %134 = vmatpush1.msra.mxu0 0.0
    %135 = vmatprep.subr.mxu0 0.0
    %136 = vmatpush1.msra.mxu0 0.0
    %137 = vmatprep.subr.mxu0 0.0
    %138 = vmatpush1.msra.mxu0 0.0
    %139 = vmatprep.subr.mxu0 0.0
    %140 = vmatpush1.msra.mxu0 0.0
    %141 = vmatprep.subr.mxu0 0.0
    %142 = vmatpush1.msra.mxu0 0.0
    %143 = vmatprep.subr.mxu0 0.0
    %144 = vmatpush1.msra.mxu0 0.0
    %145 = vmatprep.subr.mxu0 0.0
    %146 = vmatpush1.msra.mxu0 0.0
    %147 = vmatprep.subr.mxu0 0.0
    %148 = vmatpush1.msra.mxu0 0.0
    %149 = vmatprep.subr.mxu0 0.0
    %150 = vmatpush1.msra.mxu0 0.0
    %151 = vmatprep.subr.mxu0 0.0
    %152 = vmatpush1.msra.mxu0 0.0
    %153 = vmatprep.subr.mxu0 0.0
    %154 = vmatpush1.msra.mxu0 0.0
    %155 = vmatprep.subr.mxu0 0.0
    %156 = vmatpush1.msra.mxu0 0.0
    %157 = vmatprep.subr.mxu0 0.0
    %158 = vmatpush1.msra.mxu0 0.0
    %159 = vmatprep.subr.mxu0 0.0
    %160 = vmatpush1.msra.mxu0 0.0
    %161 = vmatprep.subr.mxu0 0.0
    %162 = vmatpush1.msra.mxu0 0.0
    %163 = vmatprep.mubr.f32.mxu0 0.0
    %164 = vmatmul.mubr.f32.gmra.mrb[0].mxu0 %v76
    %v165 = vpop.f32.mrb[0].mxu0
    %v166 = vadd.f32 %v72, %v165
    %v167 = vpop.f32.mrb[0].mxu0
    %168 = vmatprep.mubr.f32.mxu0 0.0
    %169 = vmatmul.mubr.f32.gmra.mrb[0].mxu0 %v79
    %v170 = vpop.f32.mrb[0].mxu0
    %v171 = vadd.f32 %v72, %v170
    %v172 = vpop.f32.mrb[0].mxu0
    %173 = vmatprep.mubr.f32.mxu0 0.0
    %174 = vmatmul.mubr.f32.gmra.mrb[0].mxu0 %v82
    %v175 = vpop.f32.mrb[0].mxu0
    %v176 = vadd.f32 %v72, %v175
    %v177 = vpop.f32.mrb[0].mxu0
    %178 = vmatprep.mubr.f32.mxu0 0.0
    %179 = vmatmul.mubr.f32.gmra.mrb[0].mxu0 %v85
    %v180 = vpop.f32.mrb[0].mxu0
    %v181 = vadd.f32 %v72, %v180
    %v182 = vpop.f32.mrb[0].mxu0
    %183 = vmatprep.mubr.f32.mxu0 0.0
    %184 = vmatmul.mubr.f32.gmra.mrb[0].mxu0 %v88
    %v185 = vpop.f32.mrb[0].mxu0
    %v186 = vadd.f32 %v72, %v185
    %v187 = vpop.f32.mrb[0].mxu0
    %188 = vmatprep.mubr.f32.mxu0 0.0
    %189 = vmatmul.mubr.f32.gmra.mrb[0].mxu0 %v91
    %v190 = vpop.f32.mrb[0].mxu0
    %v191 = vadd.f32 %v72, %v190
    %v192 = vpop.f32.mrb[0].mxu0
    %193 = vmatprep.mubr.f32.mxu0 0.0
    %194 = vmatmul.mubr.f32.gmra.mrb[0].mxu0 %v94
    %v195 = vpop.f32.mrb[0].mxu0
    %v196 = vadd.f32 %v72, %v195
    %v197 = vpop.f32.mrb[0].mxu0
    %198 = vmatprep.mubr.f32.mxu0 0.0
    %199 = vmatmul.mubr.f32.gmra.mrb[0].mxu0 %v97
    %v200 = vpop.f32.mrb[0].mxu0
    %v201 = vadd.f32 %v72, %v200
    %v202 = vpop.f32.mrb[0].mxu0
    %203 = vdwg.mxu0
    %v204 = vmax.f32 %v166, 0.0
    %v205 = vmax.f32 %v171, 0.0
    %v206 = vmax.f32 %v176, 0.0
    %v207 = vmax.f32 %v181, 0.0
    %v208 = vmax.f32 %v186, 0.0
    %v209 = vmax.f32 %v191, 0.0
    %v210 = vmax.f32 %v196, 0.0
    %v211 = vmax.f32 %v201, 0.0
    %v212 = vld [vmem:[#allocation2] sm:$0xff]
    %v213 = vld [vmem:[#allocation2 + $0x8] sm:$0xff]
    %v214 = vld [vmem:[#allocation2 + $0x10] sm:$0xff]
    %v215 = vld [vmem:[#allocation2 + $0x18] sm:$0xff]
    %v216 = vld [vmem:[#allocation2 + $0x20] sm:$0xff]
    %v217 = vld [vmem:[#allocation2 + $0x28] sm:$0xff]
    %v218 = vld [vmem:[#allocation2 + $0x30] sm:$0xff]
    %v219 = vld [vmem:[#allocation2 + $0x38] sm:$0xff]
    %v220 = vld [vmem:[#allocation2 + $0x40] sm:$0xff]
    %v221 = vld [vmem:[#allocation2 + $0x48] sm:$0xff]
    %v222 = vld [vmem:[#allocation2 + $0x50] sm:$0xff]
    %v223 = vld [vmem:[#allocation2 + $0x58] sm:$0xff]
    %v224 = vld [vmem:[#allocation2 + $0x60] sm:$0xff]
    %v225 = vld [vmem:[#allocation2 + $0x68] sm:$0xff]
    %v226 = vld [vmem:[#allocation2 + $0x70] sm:$0xff]
    %v227 = vld [vmem:[#allocation2 + $0x78] sm:$0xff]
    %v228 = vld [vmem:[%s4] sm:$0x1]
    %v230 = vlaneseq
    %v231 = vshrl.u32 %v230, 7
    %v232 = vsub.s32 0, %v231
    %v233 = vrot.slane %v228, %v232
    %235 = vmatprep.subr.mxu0 0.0
    %236 = vmatpush1.msra.mxu0 %v212
    %237 = vmatprep.subr.mxu0 0.0
    %238 = vmatpush1.msra.mxu0 %v213
    %239 = vmatprep.subr.mxu0 0.0
    %240 = vmatpush1.msra.mxu0 %v214
    %241 = vmatprep.subr.mxu0 0.0
    %242 = vmatpush1.msra.mxu0 %v215
    %243 = vmatprep.subr.mxu0 0.0
    %244 = vmatpush1.msra.mxu0 %v216
    %245 = vmatprep.subr.mxu0 0.0
    %246 = vmatpush1.msra.mxu0 %v217
    %247 = vmatprep.subr.mxu0 0.0
    %248 = vmatpush1.msra.mxu0 %v218
    %249 = vmatprep.subr.mxu0 0.0
    %250 = vmatpush1.msra.mxu0 %v219
    %251 = vmatprep.subr.mxu0 0.0
    %252 = vmatpush1.msra.mxu0 %v220
    %253 = vmatprep.subr.mxu0 0.0
    %254 = vmatpush1.msra.mxu0 %v221
    %255 = vmatprep.subr.mxu0 0.0
    %256 = vmatpush1.msra.mxu0 %v222
    %257 = vmatprep.subr.mxu0 0.0
    %258 = vmatpush1.msra.mxu0 %v223
    %259 = vmatprep.subr.mxu0 0.0
    %260 = vmatpush1.msra.mxu0 %v224
    %261 = vmatprep.subr.mxu0 0.0
    %262 = vmatpush1.msra.mxu0 %v225
    %263 = vmatprep.subr.mxu0 0.0
    %264 = vmatpush1.msra.mxu0 %v226
    %265 = vmatprep.subr.mxu0 0.0
    %266 = vmatpush1.msra.mxu0 %v227
    %267 = vmatprep.subr.mxu0 0.0
    %268 = vmatpush1.msra.mxu0 0.0
    %269 = vmatprep.subr.mxu0 0.0
    %270 = vmatpush1.msra.mxu0 0.0
    %271 = vmatprep.subr.mxu0 0.0
    %272 = vmatpush1.msra.mxu0 0.0
    %273 = vmatprep.subr.mxu0 0.0
    %274 = vmatpush1.msra.mxu0 0.0
    %275 = vmatprep.subr.mxu0 0.0
    %276 = vmatpush1.msra.mxu0 0.0
    %277 = vmatprep.subr.mxu0 0.0
    %278 = vmatpush1.msra.mxu0 0.0
    %279 = vmatprep.subr.mxu0 0.0
    %280 = vmatpush1.msra.mxu0 0.0
    %281 = vmatprep.subr.mxu0 0.0
    %282 = vmatpush1.msra.mxu0 0.0
    %283 = vmatprep.subr.mxu0 0.0
    %284 = vmatpush1.msra.mxu0 0.0
    %285 = vmatprep.subr.mxu0 0.0
    %286 = vmatpush1.msra.mxu0 0.0
    %287 = vmatprep.subr.mxu0 0.0
    %288 = vmatpush1.msra.mxu0 0.0
    %289 = vmatprep.subr.mxu0 0.0
    %290 = vmatpush1.msra.mxu0 0.0
    %291 = vmatprep.subr.mxu0 0.0
    %292 = vmatpush1.msra.mxu0 0.0
    %293 = vmatprep.subr.mxu0 0.0
    %294 = vmatpush1.msra.mxu0 0.0
    %295 = vmatprep.subr.mxu0 0.0
    %296 = vmatpush1.msra.mxu0 0.0
    %297 = vmatprep.subr.mxu0 0.0
    %298 = vmatpush1.msra.mxu0 0.0
    %299 = vmatprep.mubr.f32.mxu0 0.0
    %300 = vmatmul.mubr.f32.gmra.mrb[0].mxu0 %v204
    %v301 = vpop.f32.mrb[0].mxu0
    %v302 = vadd.f32 %v233, %v301
    %v303 = vpop.f32.mrb[0].mxu0
    %304 = vmatprep.mubr.f32.mxu0 0.0
    %305 = vmatmul.mubr.f32.gmra.mrb[0].mxu0 %v205
    %v306 = vpop.f32.mrb[0].mxu0
    %v307 = vadd.f32 %v233, %v306
    %v308 = vpop.f32.mrb[0].mxu0
    %309 = vmatprep.mubr.f32.mxu0 0.0
    %310 = vmatmul.mubr.f32.gmra.mrb[0].mxu0 %v206
    %v311 = vpop.f32.mrb[0].mxu0
    %v312 = vadd.f32 %v233, %v311
    %v313 = vpop.f32.mrb[0].mxu0
    %314 = vmatprep.mubr.f32.mxu0 0.0
    %315 = vmatmul.mubr.f32.gmra.mrb[0].mxu0 %v207
    %v316 = vpop.f32.mrb[0].mxu0
    %v317 = vadd.f32 %v233, %v316
    %v318 = vpop.f32.mrb[0].mxu0
    %319 = vmatprep.mubr.f32.mxu0 0.0
    %320 = vmatmul.mubr.f32.gmra.mrb[0].mxu0 %v208
    %v321 = vpop.f32.mrb[0].mxu0
    %v322 = vadd.f32 %v233, %v321
    %v323 = vpop.f32.mrb[0].mxu0
    %324 = vmatprep.mubr.f32.mxu0 0.0
    %325 = vmatmul.mubr.f32.gmra.mrb[0].mxu0 %v209
    %v326 = vpop.f32.mrb[0].mxu0
    %v327 = vadd.f32 %v233, %v326
    %v328 = vpop.f32.mrb[0].mxu0
    %329 = vmatprep.mubr.f32.mxu0 0.0
    %330 = vmatmul.mubr.f32.gmra.mrb[0].mxu0 %v210
    %v331 = vpop.f32.mrb[0].mxu0
    %v332 = vadd.f32 %v233, %v331
    %v333 = vpop.f32.mrb[0].mxu0
    %334 = vmatprep.mubr.f32.mxu0 0.0
    %335 = vmatmul.mubr.f32.gmra.mrb[0].mxu0 %v211
    %v336 = vpop.f32.mrb[0].mxu0
    %v337 = vadd.f32 %v233, %v336
    %v338 = vpop.f32.mrb[0].mxu0
    %339 = vdwg.mxu0
    %v340 = vmax.f32 %v302, 0.0
    %v341 = vmax.f32 %v307, 0.0
    %v342 = vmax.f32 %v312, 0.0
    %v343 = vmax.f32 %v317, 0.0
    %v344 = vmax.f32 %v322, 0.0
    %v345 = vmax.f32 %v327, 0.0
    %v346 = vmax.f32 %v332, 0.0
    %v347 = vmax.f32 %v337, 0.0
    %v348 = vld [vmem:[#allocation5] sm:$0xff]
    %v349 = vld [vmem:[#allocation5 + $0x8] sm:$0xff]
    %v350 = vld [vmem:[#allocation5 + $0x10] sm:$0xff]
    %v351 = vld [vmem:[#allocation5 + $0x18] sm:$0xff]
    %v352 = vld [vmem:[#allocation5 + $0x20] sm:$0xff]
    %v353 = vld [vmem:[#allocation5 + $0x28] sm:$0xff]
    %v354 = vld [vmem:[#allocation5 + $0x30] sm:$0xff]
    %v355 = vld [vmem:[#allocation5 + $0x38] sm:$0xff]
    %v356 = vld [vmem:[#allocation5 + $0x40] sm:$0xff]
    %v357 = vld [vmem:[#allocation5 + $0x48] sm:$0xff]
    %v358 = vld [vmem:[#allocation5 + $0x50] sm:$0xff]
    %v359 = vld [vmem:[#allocation5 + $0x58] sm:$0xff]
    %v360 = vld [vmem:[#allocation5 + $0x60] sm:$0xff]
    %v361 = vld [vmem:[#allocation5 + $0x68] sm:$0xff]
    %v362 = vld [vmem:[#allocation5 + $0x70] sm:$0xff]
    %v363 = vld [vmem:[#allocation5 + $0x78] sm:$0xff]
    %v364 = vld [vmem:[%s6] sm:$0x1]
    %v366 = vlaneseq
    %v367 = vshrl.u32 %v366, 7
    %v368 = vsub.s32 0, %v367
    %v369 = vrot.slane %v364, %v368
    %371 = vmatprep.subr.mxu0 0.0
    %372 = vmatpush1.msra.mxu0 %v348
    %373 = vmatprep.subr.mxu0 0.0
    %374 = vmatpush1.msra.mxu0 %v349
    %375 = vmatprep.subr.mxu0 0.0
    %376 = vmatpush1.msra.mxu0 %v350
    %377 = vmatprep.subr.mxu0 0.0
    %378 = vmatpush1.msra.mxu0 %v351
    %379 = vmatprep.subr.mxu0 0.0
    %380 = vmatpush1.msra.mxu0 %v352
    %381 = vmatprep.subr.mxu0 0.0
    %382 = vmatpush1.msra.mxu0 %v353
    %383 = vmatprep.subr.mxu0 0.0
    %384 = vmatpush1.msra.mxu0 %v354
    %385 = vmatprep.subr.mxu0 0.0
    %386 = vmatpush1.msra.mxu0 %v355
    %387 = vmatprep.subr.mxu0 0.0
    %388 = vmatpush1.msra.mxu0 %v356
    %389 = vmatprep.subr.mxu0 0.0
    %390 = vmatpush1.msra.mxu0 %v357
    %391 = vmatprep.subr.mxu0 0.0
    %392 = vmatpush1.msra.mxu0 %v358
    %393 = vmatprep.subr.mxu0 0.0
    %394 = vmatpush1.msra.mxu0 %v359
    %395 = vmatprep.subr.mxu0 0.0
    %396 = vmatpush1.msra.mxu0 %v360
    %397 = vmatprep.subr.mxu0 0.0
    %398 = vmatpush1.msra.mxu0 %v361
    %399 = vmatprep.subr.mxu0 0.0
    %400 = vmatpush1.msra.mxu0 %v362
    %401 = vmatprep.subr.mxu0 0.0
    %402 = vmatpush1.msra.mxu0 %v363
    %403 = vmatprep.subr.mxu0 0.0
    %404 = vmatpush1.msra.mxu0 0.0
    %405 = vmatprep.subr.mxu0 0.0
    %406 = vmatpush1.msra.mxu0 0.0
    %407 = vmatprep.subr.mxu0 0.0
    %408 = vmatpush1.msra.mxu0 0.0
    %409 = vmatprep.subr.mxu0 0.0
    %410 = vmatpush1.msra.mxu0 0.0
    %411 = vmatprep.subr.mxu0 0.0
    %412 = vmatpush1.msra.mxu0 0.0
    %413 = vmatprep.subr.mxu0 0.0
    %414 = vmatpush1.msra.mxu0 0.0
    %415 = vmatprep.subr.mxu0 0.0
    %416 = vmatpush1.msra.mxu0 0.0
    %417 = vmatprep.subr.mxu0 0.0
    %418 = vmatpush1.msra.mxu0 0.0
    %419 = vmatprep.subr.mxu0 0.0
    %420 = vmatpush1.msra.mxu0 0.0
    %421 = vmatprep.subr.mxu0 0.0
    %422 = vmatpush1.msra.mxu0 0.0
    %423 = vmatprep.subr.mxu0 0.0
    %424 = vmatpush1.msra.mxu0 0.0
    %425 = vmatprep.subr.mxu0 0.0
    %426 = vmatpush1.msra.mxu0 0.0
    %427 = vmatprep.subr.mxu0 0.0
    %428 = vmatpush1.msra.mxu0 0.0
    %429 = vmatprep.subr.mxu0 0.0
    %430 = vmatpush1.msra.mxu0 0.0
    %431 = vmatprep.subr.mxu0 0.0
    %432 = vmatpush1.msra.mxu0 0.0
    %433 = vmatprep.subr.mxu0 0.0
    %434 = vmatpush1.msra.mxu0 0.0
    %435 = vmatprep.mubr.f32.mxu0 0.0
    %436 = vmatmul.mubr.f32.gmra.mrb[0].mxu0 %v340
    %v437 = vpop.f32.mrb[0].mxu0
    %v438 = vadd.f32 %v369, %v437
    %v439 = vpop.f32.mrb[0].mxu0
    %440 = vmatprep.mubr.f32.mxu0 0.0
    %441 = vmatmul.mubr.f32.gmra.mrb[0].mxu0 %v341
    %v442 = vpop.f32.mrb[0].mxu0
    %v443 = vadd.f32 %v369, %v442
    %v444 = vpop.f32.mrb[0].mxu0
    %445 = vmatprep.mubr.f32.mxu0 0.0
    %446 = vmatmul.mubr.f32.gmra.mrb[0].mxu0 %v342
    %v447 = vpop.f32.mrb[0].mxu0
    %v448 = vadd.f32 %v369, %v447
    %v449 = vpop.f32.mrb[0].mxu0
    %450 = vmatprep.mubr.f32.mxu0 0.0
    %451 = vmatmul.mubr.f32.gmra.mrb[0].mxu0 %v343
    %v452 = vpop.f32.mrb[0].mxu0
    %v453 = vadd.f32 %v369, %v452
    %v454 = vpop.f32.mrb[0].mxu0
    %455 = vmatprep.mubr.f32.mxu0 0.0
    %456 = vmatmul.mubr.f32.gmra.mrb[0].mxu0 %v344
    %v457 = vpop.f32.mrb[0].mxu0
    %v458 = vadd.f32 %v369, %v457
    %v459 = vpop.f32.mrb[0].mxu0
    %460 = vmatprep.mubr.f32.mxu0 0.0
    %461 = vmatmul.mubr.f32.gmra.mrb[0].mxu0 %v345
    %v462 = vpop.f32.mrb[0].mxu0
    %v463 = vadd.f32 %v369, %v462
    %v464 = vpop.f32.mrb[0].mxu0
    %465 = vmatprep.mubr.f32.mxu0 0.0
    %466 = vmatmul.mubr.f32.gmra.mrb[0].mxu0 %v346
    %v467 = vpop.f32.mrb[0].mxu0
    %v468 = vadd.f32 %v369, %v467
    %v469 = vpop.f32.mrb[0].mxu0
    %470 = vmatprep.mubr.f32.mxu0 0.0
    %471 = vmatmul.mubr.f32.gmra.mrb[0].mxu0 %v347
    %v472 = vpop.f32.mrb[0].mxu0
    %v473 = vadd.f32 %v369, %v472
    %v474 = vpop.f32.mrb[0].mxu0
    %475 = vdwg.mxu0
    %476 = vst [vmem:[#allocation7] sm:$0xff] %v438
    %477 = vst [vmem:[#allocation7 + $0x8] sm:$0xff] %v443
    %478 = vst [vmem:[#allocation7 + $0x10] sm:$0xff] %v448
    %479 = vst [vmem:[#allocation7 + $0x18] sm:$0xff] %v453
    %480 = vst [vmem:[#allocation7 + $0x20] sm:$0xff] %v458
    %481 = vst [vmem:[#allocation7 + $0x28] sm:$0xff] %v463
    %482 = vst [vmem:[#allocation7 + $0x30] sm:$0xff] %v468
    %483 = vst [vmem:[#allocation7 + $0x38] sm:$0xff] %v473
    // Predicated region
    $region38: #{tpu_custom_call.1} parent=1 // pred_check
      _
    $region39: #{tpu_custom_call.1} parent=1 // pred_check_branch
      %485 = sbr.rel (0) target = $region41
    $region40: #{tpu_custom_call.1} parent=1 // pred_region
      %s487 = ssub.s32 1024, 1024
      %488 = vsyncadd [#allocation4], %s487
      %s489 = sshll.u32 [#allocation7], 4
      %s490 = int_to_ptr.vmem [resolvable:$true] %s489
      %495 = dma.vmem_to_hbm [thread:$0]  %s490, 1024, %s7, [#allocation4], 128, 128, 8
    $region41: #{tpu_custom_call.1} parent=1 // pred_fallthru
      _
    // Predicated region
    $region42: #{tpu_custom_call.1} parent=1 // pred_check
      _
    $region43: #{tpu_custom_call.1} parent=1 // pred_check_branch
      %497 = sbr.rel (0) target = $region45
    $region44: #{tpu_custom_call.1} parent=1 // pred_region
      %498 = dma.done [#allocation4], 1024
    $region45: #{tpu_custom_call.1} parent=1 // pred_fallthru
      _
    %499 = vsyncpa [#allocation3], 1
    %500 = vsyncpa [#allocation6], 1
    %501 = vsyncpa [#allocation4], 1

</llo_original>
